<compile_context>
chip_gen: v6e
topology: v6e:2x2x1
jax: 0.10.0
libtpu: 0.0.40
codegen_flags: <defaults>
</compile_context>

<pallas_src>
import jax
import jax.numpy as jnp
from jax.experimental import pallas as pl
from jax.experimental.pallas import tpu as pltpu


# ---- packed weight-slab row layout (every matmul slice is 8-row aligned) ----
_W1_START, _W1_END = 0, 192      # w1 (192,16)  -> cols  0..15
_WP_START, _WP_END = 192, 200    # wp (3,16)    -> cols 16..31 (rows 195..199 zero)
_WL_START, _WL_END = 200, 328    # wl (116,32)  -> cols 32..63 (rows 316..327 zero)
_BIAS_ROW = 328                  # [b1 | bp | bl]
_W2_START, _W2_END = 336, 368    # w2 (32,2)    -> cols 0..1
_B2_ROW = 368                    # b2           -> cols 0..1
_W_ROWS = 376                    # multiple of 8
_W_COLS = 64


def transformer3_kernel(p_ref, enc_ref, g_ref, l_ref, w_ref, out_ref):
    B = enc_ref.shape[0]
    f32 = jnp.float32

    # Fused activation contraction: the three dots write disjoint column
    # ranges of the 64-wide slab (0..15, 16..31, 32..63), so summing them is
    # exactly the single block-diagonal matmul, with no concat anywhere.
    y = jnp.dot(enc_ref[...], w_ref[_W1_START:_W1_END, :],
                preferred_element_type=f32)                       # (B, 64)

    p_pad = jnp.concatenate(
        [p_ref[...], jnp.zeros((B, 5), f32)], axis=1)             # (B, 8) K-aligned
    y = y + jnp.dot(p_pad, w_ref[_WP_START:_WP_END, :],
                    preferred_element_type=f32)

    lsum = jnp.sum(l_ref[...], axis=1)                            # (B, 116) XLU reduce
    lsum = jnp.concatenate(
        [lsum, jnp.zeros((B, 12), f32)], axis=1)                  # (B, 128) K-aligned
    y = y + jnp.dot(lsum, w_ref[_WL_START:_WL_END, :],
                    preferred_element_type=f32)

    # Single broadcast bias add: [b1 | bp | bl].
    y = y + w_ref[_BIAS_ROW:_BIAS_ROW + 1, :]                     # (B, 64)

    # Gate: g*cat + (1-g)*lo  ==  lo + g*(cat - lo).
    cat = y[:, 0:32]
    lo = y[:, 32:64]
    f_o = lo + g_ref[...] * (cat - lo)                            # (B, 32)

    # dense_2 against the 64-wide slab section; only cols 0..1 are non-zero.
    res = jnp.dot(f_o, w_ref[_W2_START:_W2_END, :],
                  preferred_element_type=f32)
    res = res + w_ref[_B2_ROW:_B2_ROW + 1, :]
    out_ref[...] = res                                            # (B, 64) lane-dense


def pack_params(params):
    """Pack the 4 Linear layers (weights pre-transposed to (in,out)) + biases
    into a single (376, 64) f32 slab.  Done once, outside the hot path."""
    w1, b1, wp, bp, wl, bl, w2, b2 = params
    W = jnp.zeros((_W_ROWS, _W_COLS), jnp.float32)
    W = W.at[_W1_START:_W1_END, 0:16].set(w1)        # dense_1 weight
    W = W.at[_WP_START:_WP_START + 3, 16:32].set(wp) # fc_p    weight
    W = W.at[_WL_START:_WL_START + 116, 32:64].set(wl)  # self.l weight
    W = W.at[_BIAS_ROW, 0:16].set(b1)                # dense_1 bias
    W = W.at[_BIAS_ROW, 16:32].set(bp)               # fc_p    bias
    W = W.at[_BIAS_ROW, 32:64].set(bl)               # self.l  bias
    W = W.at[_W2_START:_W2_END, 0:2].set(w2)         # dense_2 weight
    W = W.at[_B2_ROW, 0:2].set(b2)                   # dense_2 bias
    return W


@jax.jit
def transformer3_forward(p, enc_inputs, g, f, l, w_all):
    del f  # unused by the reference forward pass
    B = enc_inputs.shape[0]
    vmem = pl.BlockSpec(memory_space=pltpu.MemorySpace.VMEM)
    # No grid: whole-array VMEM residency (total payload < 200 KB at B=2).
    # TODO(synk): if B scales, add a 1-D "parallel" grid over B (tile multiple
    # of 8; ~2K-4K rows to fit v7x's 64 MiB VMEM with double-buffering) so the
    # batch axis shards across v7x's two TensorCores.
    out64 = pl.pallas_call(
        transformer3_kernel,
        out_shape=jax.ShapeDtypeStruct((B, _W_COLS), jnp.float32),
        in_specs=[vmem, vmem, vmem, vmem, vmem],
        out_specs=vmem,
    )(p, enc_inputs, g, l, w_all)
    # Lane-dense kernel output; the 2-column slice fuses into the consumer.
    return out64[:, :2]


def init_linear(key, in_f, out_f):
    """Deterministic init mimicking torch.nn.Linear (uniform +/- 1/sqrt(in))."""
    k_w, k_b = jax.random.split(key)
    bound = 1.0 / float(in_f) ** 0.5
    w = jax.random.uniform(k_w, (in_f, out_f), jnp.float32, -bound, bound)
    b = jax.random.uniform(k_b, (out_f,), jnp.float32, -bound, bound)
    return w, b


def reference_forward(p, enc_inputs, g, f, l, params):
    """Pure-JAX reference matching the PyTorch module semantics."""
    del f
    w1, b1, wp, bp, wl, bl, w2, b2 = params
    x = enc_inputs @ w1 + b1
    pp = p @ wp + bp
    lo = l.sum(axis=1) @ wl + bl
    f_o = g * jnp.concatenate([x, pp], axis=1) + (1.0 - g) * lo
    return f_o @ w2 + b2


if __name__ == "__main__":
    key = jax.random.PRNGKey(0)
    keys = jax.random.split(key, 9)

    B, S = 2, 8
    p = jax.random.normal(keys[0], (B, 3), jnp.float32)
    enc_inputs = jax.random.normal(keys[1], (B, 192), jnp.float32)
    g = jax.random.uniform(keys[2], (B, 32), jnp.float32)
    f = jax.random.normal(keys[3], (B, 32), jnp.float32)   # unused by forward
    l = jax.random.normal(keys[4], (B, S, 116), jnp.float32)

    w1, b1 = init_linear(keys[5], 192, 16)   # dense_1
    wp, bp = init_linear(keys[6], 3, 16)     # fc_p
    wl, bl = init_linear(keys[7], 116, 32)   # self.l
    w2, b2 = init_linear(keys[8], 32, 2)     # dense_2
    params = (w1, b1, wp, bp, wl, bl, w2, b2)

    w_all = pack_params(params)              # one-time parameter packing

    out = transformer3_forward(p, enc_inputs, g, f, l, w_all)
    out = jax.block_until_ready(out)

    ref = reference_forward(p, enc_inputs, g, f, l, params)
    assert out.shape == (B, 2)
    assert jnp.allclose(out, ref, atol=1e-4, rtol=1e-4), "mismatch vs reference"

    print("KERNEL_OK")
</pallas_src>

<mosaic_0001>
module attributes {stable_mosaic.version = 11 : i64} {
  func.func @transformer3_kernel(%arg0: memref<2x3xf32, #tpu.memory_space<vmem>>, %arg1: memref<2x192xf32, #tpu.memory_space<vmem>>, %arg2: memref<2x32xf32, #tpu.memory_space<vmem>>, %arg3: memref<2x8x116xf32, #tpu.memory_space<vmem>>, %arg4: memref<376x64xf32, #tpu.memory_space<vmem>>, %arg5: memref<2x64xf32, #tpu.memory_space<vmem>>) attributes {dimension_semantics = [], scalar_prefetch = 0 : i64, scratch_operands = 0 : i64, tpu.core_type = #tpu.core_type<tc>} {
    %c0 = arith.constant 0 : index
    %c0_0 = arith.constant 0 : index
    %0 = vector.load %arg1[%c0, %c0_0] : memref<2x192xf32, #tpu.memory_space<vmem>>, vector<2x192xf32>
    %c0_1 = arith.constant 0 : index
    %c0_2 = arith.constant 0 : index
    %1 = vector.load %arg4[%c0_1, %c0_2] : memref<376x64xf32, #tpu.memory_space<vmem>>, vector<192x64xf32>
    %cst = arith.constant dense<0.000000e+00> : vector<2x64xf32>
    %2 = tpu.matmul %0, %1, %cst {dimension_numbers = #tpu.dot_dimension_numbers<[1], [0], [0], [1], [0, 0, 1, 1], [], []>} : vector<2x192xf32>, vector<192x64xf32>, vector<2x64xf32> -> vector<2x64xf32>
    %c0_3 = arith.constant 0 : index
    %c0_4 = arith.constant 0 : index
    %3 = vector.load %arg0[%c0_3, %c0_4] : memref<2x3xf32, #tpu.memory_space<vmem>>, vector<2x3xf32>
    %cst_5 = arith.constant 0.000000e+00 : f32
    %4 = vector.broadcast %cst_5 : f32 to vector<2x5xf32>
    %5 = tpu.concatenate %3, %4 in 1 : vector<2x3xf32>, vector<2x5xf32> -> vector<2x8xf32>
    %c192 = arith.constant 192 : index
    %c0_6 = arith.constant 0 : index
    %6 = vector.load %arg4[%c192, %c0_6] : memref<376x64xf32, #tpu.memory_space<vmem>>, vector<8x64xf32>
    %cst_7 = arith.constant dense<0.000000e+00> : vector<2x64xf32>
    %7 = tpu.matmul %5, %6, %cst_7 {dimension_numbers = #tpu.dot_dimension_numbers<[1], [0], [0], [1], [0, 0, 1, 1], [], []>} : vector<2x8xf32>, vector<8x64xf32>, vector<2x64xf32> -> vector<2x64xf32>
    %8 = arith.addf %2, %7 : vector<2x64xf32>
    %c0_8 = arith.constant 0 : index
    %c0_9 = arith.constant 0 : index
    %c0_10 = arith.constant 0 : index
    %9 = vector.load %arg3[%c0_8, %c0_9, %c0_10] : memref<2x8x116xf32, #tpu.memory_space<vmem>>, vector<2x8x116xf32>
    %cst_11 = arith.constant dense<0.000000e+00> : vector<2x116xf32>
    %10 = vector.multi_reduction <add>, %9, %cst_11 [1] : vector<2x8x116xf32> to vector<2x116xf32>
    %cst_12 = arith.constant 0.000000e+00 : f32
    %11 = vector.broadcast %cst_12 : f32 to vector<2x12xf32>
    %12 = tpu.concatenate %10, %11 in 1 : vector<2x116xf32>, vector<2x12xf32> -> vector<2x128xf32>
    %c200 = arith.constant 200 : index
    %c0_13 = arith.constant 0 : index
    %13 = vector.load %arg4[%c200, %c0_13] : memref<376x64xf32, #tpu.memory_space<vmem>>, vector<128x64xf32>
    %cst_14 = arith.constant dense<0.000000e+00> : vector<2x64xf32>
    %14 = tpu.matmul %12, %13, %cst_14 {dimension_numbers = #tpu.dot_dimension_numbers<[1], [0], [0], [1], [0, 0, 1, 1], [], []>} : vector<2x128xf32>, vector<128x64xf32>, vector<2x64xf32> -> vector<2x64xf32>
    %15 = arith.addf %8, %14 : vector<2x64xf32>
    %c328 = arith.constant 328 : index
    %c0_15 = arith.constant 0 : index
    %16 = vector.load %arg4[%c328, %c0_15] : memref<376x64xf32, #tpu.memory_space<vmem>>, vector<1x64xf32>
    %17 = vector.broadcast %16 : vector<1x64xf32> to vector<2x64xf32>
    %18 = arith.addf %15, %17 : vector<2x64xf32>
    %19 = vector.extract_strided_slice %18 {offsets = [0, 0], sizes = [2, 32], strides = [1, 1]} : vector<2x64xf32> to vector<2x32xf32>
    %20 = vector.extract_strided_slice %18 {offsets = [0, 32], sizes = [2, 32], strides = [1, 1]} : vector<2x64xf32> to vector<2x32xf32>
    %c0_16 = arith.constant 0 : index
    %c0_17 = arith.constant 0 : index
    %21 = vector.load %arg2[%c0_16, %c0_17] : memref<2x32xf32, #tpu.memory_space<vmem>>, vector<2x32xf32>
    %22 = arith.subf %19, %20 : vector<2x32xf32>
    %23 = arith.mulf %21, %22 : vector<2x32xf32>
    %24 = arith.addf %20, %23 : vector<2x32xf32>
    %c336 = arith.constant 336 : index
    %c0_18 = arith.constant 0 : index
    %25 = vector.load %arg4[%c336, %c0_18] : memref<376x64xf32, #tpu.memory_space<vmem>>, vector<32x64xf32>
    %cst_19 = arith.constant dense<0.000000e+00> : vector<2x64xf32>
    %26 = tpu.matmul %24, %25, %cst_19 {dimension_numbers = #tpu.dot_dimension_numbers<[1], [0], [0], [1], [0, 0, 1, 1], [], []>} : vector<2x32xf32>, vector<32x64xf32>, vector<2x64xf32> -> vector<2x64xf32>
    %c368 = arith.constant 368 : index
    %c0_20 = arith.constant 0 : index
    %27 = vector.load %arg4[%c368, %c0_20] : memref<376x64xf32, #tpu.memory_space<vmem>>, vector<1x64xf32>
    %28 = vector.broadcast %27 : vector<1x64xf32> to vector<2x64xf32>
    %29 = arith.addf %26, %28 : vector<2x64xf32>
    %c0_21 = arith.constant 0 : index
    %c0_22 = arith.constant 0 : index
    %30 = vector.load %arg5[%c0_21, %c0_22] : memref<2x64xf32, #tpu.memory_space<vmem>>, vector<2x64xf32>
    tpu.vector_store %arg5[%c0_21, %c0_22], %29 {strides = array<i32>} : memref<2x64xf32, #tpu.memory_space<vmem>>, vector<2x64xf32>,
    return
  }
}

</mosaic_0001>

<llo_original>
// kernel: transformer3_forward.1
$region0: #{transformer3_forward.1}
  #allocation0 [shape = 'u32[]', space=smem, size = 0x4, offset = 0x4, fixed_abs, tag = 'smem constant byte address 0x4 - core index']
  #allocation1 [shape = 'u32[144,128]{1,0:T(1,128)}', space=vmem, size = 0x12000, scoped, tag = 'internal scratch']
  %s0 = inlined_call_operand.vmem [shape: f32[2,3], index: 0, kind: input, shape index: {}]
  %s1 = inlined_call_operand.vmem [shape: f32[2,192], index: 1, kind: input, shape index: {}]
  %s2 = inlined_call_operand.vmem [shape: f32[2,32], index: 2, kind: input, shape index: {}]
  %s3 = inlined_call_operand.vmem [shape: f32[2,8,116], index: 3, kind: input, shape index: {}]
  %s4 = inlined_call_operand.vmem [shape: f32[376,64], index: 4, kind: input, shape index: {}]
  %s5 = inlined_call_operand.hbm [shape: f32[2,64], index: 5, kind: output, shape index: {}]
  %s6 = sld [smem:[#allocation0]]
  $region30: #{transformer3_forward.1} parent=0
    _
  %s8 = ssub.s32 1, %s6
  %s9 = scalar_select 0, %s8, %s6
  $region1: #{transformer3_forward.1} parent=0
    #allocation2 [shape = 'u8[1024]{0}', space=vmem, size = 0x400, scoped, tag = 'output window, operand 0, single buffered']
    #allocation3 [shape = 's32[1]{0}', space=sflag, size = 0x4, scoped, tag = 'scoped memory for transformer3_forward.1']
    %10 = vsyncpa [#allocation3], 0
    // Predicated region
    $region2: #{transformer3_forward.1} parent=1 // pred_check
      _
    $region3: #{transformer3_forward.1} parent=1 // pred_check_branch
      %12 = sbr.rel (0) target = $region5
    $region4: #{transformer3_forward.1} parent=1 // pred_region
      _
    $region5: #{transformer3_forward.1} parent=1 // pred_fallthru
      _
    // Predicated region
    $region6: #{transformer3_forward.1} parent=1 // pred_check
      _
    $region7: #{transformer3_forward.1} parent=1 // pred_check_branch
      %14 = sbr.rel (0) target = $region9
    $region8: #{transformer3_forward.1} parent=1 // pred_region
      _
    $region9: #{transformer3_forward.1} parent=1 // pred_fallthru
      _
    // Predicated region
    $region10: #{transformer3_forward.1} parent=1 // pred_check
      _
    $region11: #{transformer3_forward.1} parent=1 // pred_check_branch
      %16 = sbr.rel (0) target = $region13
    $region12: #{transformer3_forward.1} parent=1 // pred_region
      _
    $region13: #{transformer3_forward.1} parent=1 // pred_fallthru
      _
    // Predicated region
    $region14: #{transformer3_forward.1} parent=1 // pred_check
      _
    $region15: #{transformer3_forward.1} parent=1 // pred_check_branch
      %18 = sbr.rel (0) target = $region17
    $region16: #{transformer3_forward.1} parent=1 // pred_region
      _
    $region17: #{transformer3_forward.1} parent=1 // pred_fallthru
      _
    // Predicated region
    $region18: #{transformer3_forward.1} parent=1 // pred_check
      _
    $region19: #{transformer3_forward.1} parent=1 // pred_check_branch
      %20 = sbr.rel (0) target = $region21
    $region20: #{transformer3_forward.1} parent=1 // pred_region
      _
    $region21: #{transformer3_forward.1} parent=1 // pred_fallthru
      _
    %v21 = vld [vmem:[%s1] sm:$0xf]
    %v22 = vld [vmem:[%s4] sm:$0xff]
    %v23 = vld [vmem:[%s4 + $0x8] sm:$0xff]
    %v24 = vld [vmem:[%s4 + $0x10] sm:$0xff]
    %v25 = vld [vmem:[%s4 + $0x18] sm:$0xff]
    %v26 = vld [vmem:[%s4 + $0x20] sm:$0xff]
    %v27 = vld [vmem:[%s4 + $0x28] sm:$0xff]
    %v28 = vld [vmem:[%s4 + $0x30] sm:$0xff]
    %v29 = vld [vmem:[%s4 + $0x38] sm:$0xff]
    %v30 = vld [vmem:[%s4 + $0x40] sm:$0xff]
    %v31 = vld [vmem:[%s4 + $0x48] sm:$0xff]
    %v32 = vld [vmem:[%s4 + $0x50] sm:$0xff]
    %v33 = vld [vmem:[%s4 + $0x58] sm:$0xff]
    %v34 = vld [vmem:[%s4 + $0x60] sm:$0xff]
    %v35 = vld [vmem:[%s4 + $0x68] sm:$0xff]
    %v36 = vld [vmem:[%s4 + $0x70] sm:$0xff]
    %v37 = vld [vmem:[%s4 + $0x78] sm:$0xff]
    %v38 = vld [vmem:[%s4 + $0x80] sm:$0xff]
    %v39 = vld [vmem:[%s4 + $0x88] sm:$0xff]
    %v40 = vld [vmem:[%s4 + $0x90] sm:$0xff]
    %v41 = vld [vmem:[%s4 + $0x98] sm:$0xff]
    %v42 = vld [vmem:[%s4 + $0xa0] sm:$0xff]
    %v43 = vld [vmem:[%s4 + $0xa8] sm:$0xff]
    %v44 = vld [vmem:[%s4 + $0xb0] sm:$0xff]
    %v45 = vld [vmem:[%s4 + $0xb8] sm:$0xff]
    %v46 = vld [vmem:[%s0] sm:$0x3]
    %vm47 = vcmask 23552
    %v48 = vsel %vm47, %v46, 0.0
    %v49 = vld [vmem:[%s4 + $0xc0] sm:$0xff]
    %vm50 = vcmask 64512
    %v52 = vsel %vm50, %v48, 0
    %54 = vmatprep.subr.mxu0 0.0
    %55 = vmatpush1.msra.mxu0 0.0
    %56 = vmatprep.subr.mxu0 0.0
    %57 = vmatpush1.msra.mxu0 0.0
    %58 = vmatprep.subr.mxu0 0.0
    %59 = vmatpush1.msra.mxu0 0.0
    %60 = vmatprep.subr.mxu0 0.0
    %61 = vmatpush1.msra.mxu0 0.0
    %62 = vmatprep.subr.mxu0 0.0
    %63 = vmatpush1.msra.mxu0 0.0
    %64 = vmatprep.subr.mxu0 0.0
    %65 = vmatpush1.msra.mxu0 0.0
    %66 = vmatprep.subr.mxu0 0.0
    %67 = vmatpush1.msra.mxu0 0.0
    %68 = vmatprep.subr.mxu0 0.0
    %69 = vmatpush1.msra.mxu0 0.0
    %70 = vmatprep.subr.mxu0 0.0
    %71 = vmatpush1.msra.mxu0 0.0
    %72 = vmatprep.subr.mxu0 0.0
    %73 = vmatpush1.msra.mxu0 0.0
    %74 = vmatprep.subr.mxu0 0.0
    %75 = vmatpush1.msra.mxu0 0.0
    %76 = vmatprep.subr.mxu0 0.0
    %77 = vmatpush1.msra.mxu0 0.0
    %78 = vmatprep.subr.mxu0 0.0
    %79 = vmatpush1.msra.mxu0 0.0
    %80 = vmatprep.subr.mxu0 0.0
    %81 = vmatpush1.msra.mxu0 0.0
    %82 = vmatprep.subr.mxu0 0.0
    %83 = vmatpush1.msra.mxu0 0.0
    %84 = vmatprep.subr.mxu0 0.0
    %85 = vmatpush1.msra.mxu0 %v49
    %86 = vmatprep.subr.mxu0 0.0
    %87 = vmatpush2.msra.mxu0 0.0
    %88 = vmatprep.subr.mxu0 0.0
    %89 = vmatpush2.msra.mxu0 0.0
    %90 = vmatprep.subr.mxu0 0.0
    %91 = vmatpush2.msra.mxu0 0.0
    %92 = vmatprep.subr.mxu0 0.0
    %93 = vmatpush2.msra.mxu0 0.0
    %94 = vmatprep.subr.mxu0 0.0
    %95 = vmatpush2.msra.mxu0 0.0
    %96 = vmatprep.subr.mxu0 0.0
    %97 = vmatpush2.msra.mxu0 0.0
    %98 = vmatprep.subr.mxu0 0.0
    %99 = vmatpush2.msra.mxu0 0.0
    %100 = vmatprep.subr.mxu0 0.0
    %101 = vmatpush2.msra.mxu0 0.0
    %102 = vmatprep.subr.mxu0 0.0
    %103 = vmatpush2.msra.mxu0 0.0
    %104 = vmatprep.subr.mxu0 0.0
    %105 = vmatpush2.msra.mxu0 0.0
    %106 = vmatprep.subr.mxu0 0.0
    %107 = vmatpush2.msra.mxu0 0.0
    %108 = vmatprep.subr.mxu0 0.0
    %109 = vmatpush2.msra.mxu0 0.0
    %110 = vmatprep.subr.mxu0 0.0
    %111 = vmatpush2.msra.mxu0 0.0
    %112 = vmatprep.subr.mxu0 0.0
    %113 = vmatpush2.msra.mxu0 0.0
    %114 = vmatprep.subr.mxu0 0.0
    %115 = vmatpush2.msra.mxu0 0.0
    %116 = vmatprep.subr.mxu0 0.0
    %117 = vmatpush2.msra.mxu0 0.0
    %118 = vmatprep.mubr.f32.mxu0 0.0
    %119 = vmatmul.mubr.f32.gmra.mxu0 %v52
    %v120 = vpop.f32.mrf.mxu0
    %v121 = vadd.f32 0.0, %v120
    %v122 = vpop.f32.mrf.mxu0
    %123 = vdwg.mxu0
    %v126 = vunpack.c.l.s4 1983009808
    %v127 = vunpack.c.0.s8 %v126
    %v128 = vlaneseq
    %v129 = vshrl.u32 %v128, 7
    %v130 = vsub.s32 %v127, %v129
    %v131 = vrot.slane %v21, %v130
    %v132 = vcombine.high %v131, %v131
    %vm134 = vcmask 523264
    %v135 = vsel %vm134, %v132, 0
    %137 = vmatprep.subr.mxu0 0.0
    %138 = vmatpush1.msra.mxu0 %v37
    %139 = vmatprep.subr.mxu0 0.0
    %140 = vmatpush1.msra.mxu0 %v36
    %141 = vmatprep.subr.mxu0 0.0
    %142 = vmatpush1.msra.mxu0 %v35
    %143 = vmatprep.subr.mxu0 0.0
    %144 = vmatpush1.msra.mxu0 %v34
    %145 = vmatprep.subr.mxu0 0.0
    %146 = vmatpush1.msra.mxu0 %v33
    %147 = vmatprep.subr.mxu0 0.0
    %148 = vmatpush1.msra.mxu0 %v32
    %149 = vmatprep.subr.mxu0 0.0
    %150 = vmatpush1.msra.mxu0 %v31
    %151 = vmatprep.subr.mxu0 0.0
    %152 = vmatpush1.msra.mxu0 %v30
    %153 = vmatprep.subr.mxu0 0.0
    %154 = vmatpush1.msra.mxu0 %v29
    %155 = vmatprep.subr.mxu0 0.0
    %156 = vmatpush1.msra.mxu0 %v28
    %157 = vmatprep.subr.mxu0 0.0
    %158 = vmatpush1.msra.mxu0 %v27
    %159 = vmatprep.subr.mxu0 0.0
    %160 = vmatpush1.msra.mxu0 %v26
    %161 = vmatprep.subr.mxu0 0.0
    %162 = vmatpush1.msra.mxu0 %v25
    %163 = vmatprep.subr.mxu0 0.0
    %164 = vmatpush1.msra.mxu0 %v24
    %165 = vmatprep.subr.mxu0 0.0
    %166 = vmatpush1.msra.mxu0 %v23
    %167 = vmatprep.subr.mxu0 0.0
    %168 = vmatpush1.msra.mxu0 %v22
    %169 = vmatprep.subr.mxu0 0.0
    %170 = vmatpush2.msra.mxu0 0.0
    %171 = vmatprep.subr.mxu0 0.0
    %172 = vmatpush2.msra.mxu0 0.0
    %173 = vmatprep.subr.mxu0 0.0
    %174 = vmatpush2.msra.mxu0 0.0
    %175 = vmatprep.subr.mxu0 0.0
    %176 = vmatpush2.msra.mxu0 0.0
    %177 = vmatprep.subr.mxu0 0.0
    %178 = vmatpush2.msra.mxu0 0.0
    %179 = vmatprep.subr.mxu0 0.0
    %180 = vmatpush2.msra.mxu0 0.0
    %181 = vmatprep.subr.mxu0 0.0
    %182 = vmatpush2.msra.mxu0 0.0
    %183 = vmatprep.subr.mxu0 0.0
    %184 = vmatpush2.msra.mxu0 0.0
    %185 = vmatprep.subr.mxu0 0.0
    %186 = vmatpush2.msra.mxu0 %v45
    %187 = vmatprep.subr.mxu0 0.0
    %188 = vmatpush2.msra.mxu0 %v44
    %189 = vmatprep.subr.mxu0 0.0
    %190 = vmatpush2.msra.mxu0 %v43
    %191 = vmatprep.subr.mxu0 0.0
    %192 = vmatpush2.msra.mxu0 %v42
    %193 = vmatprep.subr.mxu0 0.0
    %194 = vmatpush2.msra.mxu0 %v41
    %195 = vmatprep.subr.mxu0 0.0
    %196 = vmatpush2.msra.mxu0 %v40
    %197 = vmatprep.subr.mxu0 0.0
    %198 = vmatpush2.msra.mxu0 %v39
    %199 = vmatprep.subr.mxu0 0.0
    %200 = vmatpush2.msra.mxu0 %v38
    %201 = vmatprep.mubr.f32.mxu0 %v135
    %202 = vmatmul.mubr.f32.gmra.mxu0 %v131
    %v203 = vpop.f32.mrf.mxu0
    %v204 = vadd.f32 %v121, %v203
    %v205 = vpop.f32.mrf.mxu0
    %206 = vdwg.mxu0
    %v207 = vld [vmem:[%s3] sm:$0xff]
    %v208 = vld [vmem:[%s3 + $0x8] sm:$0xff]
    %vm209 = vcmask 949248
    %v210 = vsel %vm209, %v207, 0.0
    %v211 = vrot.slane %v210, 4
    %v212 = vadd.f32 %v210, %v211
    %v213 = vrot.slane %v212, 2
    %v214 = vadd.f32 %v212, %v213
    %v215 = vrot.slane %v214, 1
    %v216 = vadd.f32 %v214, %v215
    %v217 = vsel %vm209, %v208, 0.0
    %v218 = vrot.slane %v217, 4
    %v219 = vadd.f32 %v217, %v218
    %v220 = vrot.slane %v219, 2
    %v221 = vadd.f32 %v219, %v220
    %v222 = vrot.slane %v221, 1
    %v223 = vadd.f32 %v221, %v222
    %vm226 = vcmask 1041409
    %v227 = vsel %vm226, %v223, %v216
    %v229 = vsel %vm209, %v227, 0.0
    %v230 = vld [vmem:[%s4 + $0xc8] sm:$0xff]
    %v231 = vld [vmem:[%s4 + $0xd0] sm:$0xff]
    %v232 = vld [vmem:[%s4 + $0xd8] sm:$0xff]
    %v233 = vld [vmem:[%s4 + $0xe0] sm:$0xff]
    %v234 = vld [vmem:[%s4 + $0xe8] sm:$0xff]
    %v235 = vld [vmem:[%s4 + $0xf0] sm:$0xff]
    %v236 = vld [vmem:[%s4 + $0xf8] sm:$0xff]
    %v237 = vld [vmem:[%s4 + $0x100] sm:$0xff]
    %v238 = vld [vmem:[%s4 + $0x108] sm:$0xff]
    %v239 = vld [vmem:[%s4 + $0x110] sm:$0xff]
    %v240 = vld [vmem:[%s4 + $0x118] sm:$0xff]
    %v241 = vld [vmem:[%s4 + $0x120] sm:$0xff]
    %v242 = vld [vmem:[%s4 + $0x128] sm:$0xff]
    %v243 = vld [vmem:[%s4 + $0x130] sm:$0xff]
    %v244 = vld [vmem:[%s4 + $0x138] sm:$0xff]
    %v245 = vld [vmem:[%s4 + $0x140] sm:$0xff]
    %246 = vmatprep.subr.mxu0 0.0
    %247 = vmatpush1.msra.mxu0 %v245
    %248 = vmatprep.subr.mxu0 0.0
    %249 = vmatpush1.msra.mxu0 %v244
    %250 = vmatprep.subr.mxu0 0.0
    %251 = vmatpush1.msra.mxu0 %v243
    %252 = vmatprep.subr.mxu0 0.0
    %253 = vmatpush1.msra.mxu0 %v242
    %254 = vmatprep.subr.mxu0 0.0
    %255 = vmatpush1.msra.mxu0 %v241
    %256 = vmatprep.subr.mxu0 0.0
    %257 = vmatpush1.msra.mxu0 %v240
    %258 = vmatprep.subr.mxu0 0.0
    %259 = vmatpush1.msra.mxu0 %v239
    %260 = vmatprep.subr.mxu0 0.0
    %261 = vmatpush1.msra.mxu0 %v238
    %262 = vmatprep.subr.mxu0 0.0
    %263 = vmatpush1.msra.mxu0 %v237
    %264 = vmatprep.subr.mxu0 0.0
    %265 = vmatpush1.msra.mxu0 %v236
    %266 = vmatprep.subr.mxu0 0.0
    %267 = vmatpush1.msra.mxu0 %v235
    %268 = vmatprep.subr.mxu0 0.0
    %269 = vmatpush1.msra.mxu0 %v234
    %270 = vmatprep.subr.mxu0 0.0
    %271 = vmatpush1.msra.mxu0 %v233
    %272 = vmatprep.subr.mxu0 0.0
    %273 = vmatpush1.msra.mxu0 %v232
    %274 = vmatprep.subr.mxu0 0.0
    %275 = vmatpush1.msra.mxu0 %v231
    %276 = vmatprep.subr.mxu0 0.0
    %277 = vmatpush1.msra.mxu0 %v230
    %278 = vmatprep.subr.mxu0 0.0
    %279 = vmatpush2.msra.mxu0 0.0
    %280 = vmatprep.subr.mxu0 0.0
    %281 = vmatpush2.msra.mxu0 0.0
    %282 = vmatprep.subr.mxu0 0.0
    %283 = vmatpush2.msra.mxu0 0.0
    %284 = vmatprep.subr.mxu0 0.0
    %285 = vmatpush2.msra.mxu0 0.0
    %286 = vmatprep.subr.mxu0 0.0
    %287 = vmatpush2.msra.mxu0 0.0
    %288 = vmatprep.subr.mxu0 0.0
    %289 = vmatpush2.msra.mxu0 0.0
    %290 = vmatprep.subr.mxu0 0.0
    %291 = vmatpush2.msra.mxu0 0.0
    %292 = vmatprep.subr.mxu0 0.0
    %293 = vmatpush2.msra.mxu0 0.0
    %294 = vmatprep.subr.mxu0 0.0
    %295 = vmatpush2.msra.mxu0 0.0
    %296 = vmatprep.subr.mxu0 0.0
    %297 = vmatpush2.msra.mxu0 0.0
    %298 = vmatprep.subr.mxu0 0.0
    %299 = vmatpush2.msra.mxu0 0.0
    %300 = vmatprep.subr.mxu0 0.0
    %301 = vmatpush2.msra.mxu0 0.0
    %302 = vmatprep.subr.mxu0 0.0
    %303 = vmatpush2.msra.mxu0 0.0
    %304 = vmatprep.subr.mxu0 0.0
    %305 = vmatpush2.msra.mxu0 0.0
    %306 = vmatprep.subr.mxu0 0.0
    %307 = vmatpush2.msra.mxu0 0.0
    %308 = vmatprep.subr.mxu0 0.0
    %309 = vmatpush2.msra.mxu0 0.0
    %310 = vmatprep.mubr.f32.mxu0 0.0
    %311 = vmatmul.mubr.f32.gmra.mxu0 %v229
    %v312 = vpop.f32.mrf.mxu0
    %v313 = vadd.f32 0.0, %v312
    %v314 = vpop.f32.mrf.mxu0
    %315 = vdwg.mxu0
    %v316 = vadd.f32 %v204, %v313
    %v317 = vld [vmem:[%s4 + $0x148] sm:$0x1]
    %v318 = vlaneseq
    %v319 = vshrl.u32 %v318, 7
    %v320 = vsub.s32 0, %v319
    %v321 = vrot.slane %v317, %v320
    %v322 = vadd.f32 %v316, %v321
    %v323 = vld [vmem:[%s2] sm:$0x3]
    %325 = vrot.lane.b32.xlu0 %v322, 96
    %v326 = vpop.permute.xlu0 %325
    %v328 = vsub.f32 %v322, %v326
    %v329 = vmul.f32 %v323, %v328
    %331 = vrot.lane.b32.xlu0 %v329, 32
    %v332 = vpop.permute.xlu0 %331
    %v334 = vadd.f32 %v322, %v332
    %v335 = vld [vmem:[%s4 + $0x150] sm:$0xff]
    %v336 = vld [vmem:[%s4 + $0x158] sm:$0xff]
    %v337 = vld [vmem:[%s4 + $0x160] sm:$0xff]
    %v338 = vld [vmem:[%s4 + $0x168] sm:$0xff]
    %v339 = vld [vmem:[%s4 + $0x170] sm:$0x1]
    %v340 = vlaneseq
    %v341 = vshrl.u32 %v340, 7
    %v342 = vsub.s32 0, %v341
    %v343 = vrot.slane %v339, %v342
    %345 = vrot.lane.b32.xlu0 %v334, 96
    %v346 = vpop.permute.xlu0 %345
    %vm347 = vcmask 261120
    %v348 = vsel %vm347, %v346, 0
    %350 = vmatprep.subr.mxu0 0.0
    %351 = vmatpush1.msra.mxu0 0.0
    %352 = vmatprep.subr.mxu0 0.0
    %353 = vmatpush1.msra.mxu0 0.0
    %354 = vmatprep.subr.mxu0 0.0
    %355 = vmatpush1.msra.mxu0 0.0
    %356 = vmatprep.subr.mxu0 0.0
    %357 = vmatpush1.msra.mxu0 0.0
    %358 = vmatprep.subr.mxu0 0.0
    %359 = vmatpush1.msra.mxu0 0.0
    %360 = vmatprep.subr.mxu0 0.0
    %361 = vmatpush1.msra.mxu0 0.0
    %362 = vmatprep.subr.mxu0 0.0
    %363 = vmatpush1.msra.mxu0 0.0
    %364 = vmatprep.subr.mxu0 0.0
    %365 = vmatpush1.msra.mxu0 0.0
    %366 = vmatprep.subr.mxu0 0.0
    %367 = vmatpush1.msra.mxu0 0.0
    %368 = vmatprep.subr.mxu0 0.0
    %369 = vmatpush1.msra.mxu0 0.0
    %370 = vmatprep.subr.mxu0 0.0
    %371 = vmatpush1.msra.mxu0 0.0
    %372 = vmatprep.subr.mxu0 0.0
    %373 = vmatpush1.msra.mxu0 0.0
    %374 = vmatprep.subr.mxu0 0.0
    %375 = vmatpush1.msra.mxu0 %v338
    %376 = vmatprep.subr.mxu0 0.0
    %377 = vmatpush1.msra.mxu0 %v337
    %378 = vmatprep.subr.mxu0 0.0
    %379 = vmatpush1.msra.mxu0 %v336
    %380 = vmatprep.subr.mxu0 0.0
    %381 = vmatpush1.msra.mxu0 %v335
    %382 = vmatprep.subr.mxu0 0.0
    %383 = vmatpush2.msra.mxu0 0.0
    %384 = vmatprep.subr.mxu0 0.0
    %385 = vmatpush2.msra.mxu0 0.0
    %386 = vmatprep.subr.mxu0 0.0
    %387 = vmatpush2.msra.mxu0 0.0
    %388 = vmatprep.subr.mxu0 0.0
    %389 = vmatpush2.msra.mxu0 0.0
    %390 = vmatprep.subr.mxu0 0.0
    %391 = vmatpush2.msra.mxu0 0.0
    %392 = vmatprep.subr.mxu0 0.0
    %393 = vmatpush2.msra.mxu0 0.0
    %394 = vmatprep.subr.mxu0 0.0
    %395 = vmatpush2.msra.mxu0 0.0
    %396 = vmatprep.subr.mxu0 0.0
    %397 = vmatpush2.msra.mxu0 0.0
    %398 = vmatprep.subr.mxu0 0.0
    %399 = vmatpush2.msra.mxu0 0.0
    %400 = vmatprep.subr.mxu0 0.0
    %401 = vmatpush2.msra.mxu0 0.0
    %402 = vmatprep.subr.mxu0 0.0
    %403 = vmatpush2.msra.mxu0 0.0
    %404 = vmatprep.subr.mxu0 0.0
    %405 = vmatpush2.msra.mxu0 0.0
    %406 = vmatprep.subr.mxu0 0.0
    %407 = vmatpush2.msra.mxu0 0.0
    %408 = vmatprep.subr.mxu0 0.0
    %409 = vmatpush2.msra.mxu0 0.0
    %410 = vmatprep.subr.mxu0 0.0
    %411 = vmatpush2.msra.mxu0 0.0
    %412 = vmatprep.subr.mxu0 0.0
    %413 = vmatpush2.msra.mxu0 0.0
    %414 = vmatprep.mubr.f32.mxu0 0.0
    %415 = vmatmul.mubr.f32.gmra.mxu0 %v348
    %v416 = vpop.f32.mrf.mxu0
    %v417 = vadd.f32 %v343, %v416
    %v418 = vpop.f32.mrf.mxu0
    %419 = vdwg.mxu0
    %vm420 = vcmask 517120
    %421 = vst.msk [vmem:[#allocation2] sm:$0x3] %vm420, %v417
    // Predicated region
    $region22: #{transformer3_forward.1} parent=1 // pred_check
      _
    $region23: #{transformer3_forward.1} parent=1 // pred_check_branch
      %423 = sbr.rel (0) target = $region25
    $region24: #{transformer3_forward.1} parent=1 // pred_region
      %s425 = ssub.s32 32, 32
      %426 = vsyncadd [#allocation3], %s425
      %s428 = sshll.u32 [#allocation2], 4
      %s429 = int_to_ptr.vmem [resolvable:$true] %s428
      %431 = dma.vmem_to_hbm [thread:$0]  %s429, 32, %s5, [#allocation3]
    $region25: #{transformer3_forward.1} parent=1 // pred_fallthru
      _
    // Predicated region
    $region26: #{transformer3_forward.1} parent=1 // pred_check
      _
    $region27: #{transformer3_forward.1} parent=1 // pred_check_branch
      %433 = sbr.rel (0) target = $region29
    $region28: #{transformer3_forward.1} parent=1 // pred_region
      %434 = dma.done [#allocation3], 32
    $region29: #{transformer3_forward.1} parent=1 // pred_fallthru
      _
    %435 = vsyncpa [#allocation3], 1

</llo_original>
